<compile_context>
chip_gen: v6e
topology: v6e:2x2x1
jax: 0.10.0
libtpu: 0.0.40
codegen_flags: <defaults>
</compile_context>

<pallas_src>
import functools

import jax
import jax.numpy as jnp
from jax.experimental import pallas as pl
from jax.experimental.pallas import tpu as pltpu

EPS = 1e-3
LANES = 128
SUBLANES = 8
TARGET_TILE_BYTES = 8 << 20   # ~8 MiB per input per grid step


def _num_tensorcore_splits():
    """2 on multi-TensorCore chips (v7x, v4/v5p megacore), else 1."""
    try:
        kind = jax.devices()[0].device_kind.lower()
    except Exception:  # pragma: no cover - defensive
        return 1
    return 2 if any(t in kind for t in ("v7", "v4", "v5p")) else 1


def _charbonnier_partial_kernel(x_ref, y_ref, out_ref, acc_ref, *,
                                tile_rows, bps, rows, eps2,
                                first_masked_block):
    i = pl.program_id(0)   # split index      ("parallel")
    k = pl.program_id(1)   # block-in-split   ("arbitrary", reduction axis)

    @pl.when(k == 0)
    def _init():
        acc_ref[...] = jnp.zeros_like(acc_ref)

    # Subtract in the native (possibly packed bf16) dtype, upcast the single
    # difference to f32 for the square/sqrt/accumulate.
    d = (x_ref[...] - y_ref[...]).astype(jnp.float32)
    v = jnp.sqrt(d * d + jnp.float32(eps2))

    def _partial_sum(vals):
        # Fold (tile_rows, 128) -> (tile_rows//8, 8, 128) and add vregs:
        # pure VPU work, no per-step XLU reduce.
        return vals.reshape(-1, SUBLANES, LANES).sum(axis=0)

    if first_masked_block is None:
        # Fully covered: no block ever needs masking.
        acc_ref[...] += _partial_sum(v)
    else:
        global_block = i * bps + k
        on_boundary = global_block >= first_masked_block

        @pl.when(jnp.logical_not(on_boundary))
        def _interior():
            acc_ref[...] += _partial_sum(v)

        @pl.when(on_boundary)
        def _boundary():
            # Row-index mask: covers the partial last real block and clamped
            # phantom blocks (their global rows are all >= rows -> zeroed).
            row = jax.lax.broadcasted_iota(jnp.int32, v.shape, 0)
            global_row = global_block * tile_rows + row
            vm = jnp.where(global_row < rows, v, jnp.float32(0.0))
            acc_ref[...] += _partial_sum(vm)

    @pl.when(k == bps - 1)
    def _finalize():
        out_ref[0, 0] = jnp.sum(acc_ref[...])


def charbonnier_loss(x, y, eps=EPS, *, target_tile_bytes=TARGET_TILE_BYTES):
    """Pallas TPU implementation of CharbonnierLoss(eps).forward(x, y)."""
    assert x.shape == y.shape
    n = x.size
    eps2 = float(eps) * float(eps)

    if x.dtype != y.dtype:
        x = x.astype(jnp.float32)
        y = y.astype(jnp.float32)

    xf = x.reshape(-1)
    yf = y.reshape(-1)

    itemsize = int(x.dtype.itemsize)
    packing = max(1, 4 // itemsize)
    sub_mult = SUBLANES * packing            # 8 for f32, 16 for bf16/f16

    aligned_n = (n // LANES) * LANES
    rows = aligned_n // LANES
    tail = n - aligned_n                     # < 128 elements

    # Tiny inputs: not worth a kernel launch (and below the minimum tile).
    if rows < sub_mult:
        d = xf.astype(jnp.float32) - yf.astype(jnp.float32)
        return jnp.mean(jnp.sqrt(d * d + jnp.float32(eps2)))

    # n % 128 == 0  ->  pure bitcast reshape, zero copies.
    # TODO(synk): when n % 128 != 0 the prefix slice may still materialize a
    # copy for the custom-call operand; only the <128-element tail is truly
    # handled copy-free in the wrapper.
    x_main = xf if tail == 0 else xf[:aligned_n]
    y_main = yf if tail == 0 else yf[:aligned_n]
    x2 = x_main.reshape(rows, LANES)
    y2 = y_main.reshape(rows, LANES)

    # Byte-budgeted tile size (rounded to the dtype's sublane multiple).
    budget_rows = max(sub_mult, target_tile_bytes // (LANES * itemsize))
    budget_rows = (budget_rows // sub_mult) * sub_mult
    tile_rows = min(budget_rows, (rows // sub_mult) * sub_mult)

    num_blocks = pl.cdiv(rows, tile_rows)
    nsplit = min(_num_tensorcore_splits(), num_blocks)
    bps = pl.cdiv(num_blocks, nsplit)        # blocks per split
    total_blocks = nsplit * bps

    if rows % tile_rows != 0:
        first_masked_block = num_blocks - 1  # partial last real block onward
    elif total_blocks > num_blocks:
        first_masked_block = num_blocks      # only phantom blocks masked
    else:
        first_masked_block = None            # never mask

    kernel = functools.partial(
        _charbonnier_partial_kernel,
        tile_rows=tile_rows, bps=bps, rows=rows, eps2=eps2,
        first_masked_block=first_masked_block)

    last_block = num_blocks - 1

    def in_idx(i, k):
        # Clamp phantom blocks (re-read last real block; masked to 0 in-kernel).
        return (jnp.minimum(i * bps + k, last_block), 0)

    # 2 inputs x 2 pipeline buffers x tile + slack; explicit so bigger tiles
    # aren't rejected by v5e's 16 MiB / v6e's 32 MiB default scoped limits,
    # while the max (~36 MiB) stays well under v7x's 64 MiB physical VMEM.
    tile_bytes = tile_rows * LANES * itemsize
    vmem_limit = int(max(4 * tile_bytes + (4 << 20), 32 << 20))

    partials = pl.pallas_call(
        kernel,
        out_shape=jax.ShapeDtypeStruct((nsplit, 1), jnp.float32),
        grid_spec=pltpu.PrefetchScalarGridSpec(
            num_scalar_prefetch=0,
            grid=(nsplit, bps),
            in_specs=[
                pl.BlockSpec((tile_rows, LANES), in_idx),
                pl.BlockSpec((tile_rows, LANES), in_idx),
            ],
            out_specs=pl.BlockSpec(
                (1, 1), lambda i, k: (i, 0), memory_space=pltpu.SMEM),
            scratch_shapes=[pltpu.VMEM((SUBLANES, LANES), jnp.float32)],
        ),
        compiler_params=pltpu.CompilerParams(
            dimension_semantics=("parallel", "arbitrary"),
            vmem_limit_bytes=vmem_limit),
    )(x2, y2)

    total = jnp.sum(partials)
    if tail:
        xt = xf[aligned_n:].astype(jnp.float32)
        yt = yf[aligned_n:].astype(jnp.float32)
        dt = xt - yt
        total = total + jnp.sum(jnp.sqrt(dt * dt + jnp.float32(eps2)))
    return total / jnp.float32(n)


if __name__ == "__main__":
    key = jax.random.PRNGKey(0)
    kx, ky = jax.random.split(key)

    # 1) Aligned NCHW shape (n % 1024 == 0): main zero-copy fast path.
    shape = (2, 4, 16, 16)
    x = jax.random.normal(kx, shape, dtype=jnp.float32)
    y = jax.random.normal(ky, shape, dtype=jnp.float32)
    out = charbonnier_loss(x, y)
    jax.block_until_ready(out)
    ref = jnp.mean(jnp.sqrt((x - y) ** 2 + EPS * EPS))
    assert jnp.allclose(out, ref, rtol=1e-5, atol=1e-6), (out, ref)

    # 2) n % 128 == 0 but rows not a multiple of the tile: exercises the
    #    gated in-kernel partial-block masking (still zero-copy).
    shape2 = (3, 5, 128)                       # 1920 elements = 15 rows
    x2 = jax.random.normal(kx, shape2, dtype=jnp.float32)
    y2 = jax.random.normal(ky, shape2, dtype=jnp.float32)
    out2 = charbonnier_loss(x2, y2, target_tile_bytes=8 * LANES * 4)
    jax.block_until_ready(out2)
    ref2 = jnp.mean(jnp.sqrt((x2 - y2) ** 2 + EPS * EPS))
    assert jnp.allclose(out2, ref2, rtol=1e-5, atol=1e-6), (out2, ref2)

    # 3) Fully ragged (n % 128 != 0): kernel on aligned prefix + jnp tail.
    shape3 = (5, 7, 9, 5)                      # 1575 = 12*128 + 39
    x3 = jax.random.normal(kx, shape3, dtype=jnp.float32)
    y3 = jax.random.normal(ky, shape3, dtype=jnp.float32)
    out3 = charbonnier_loss(x3, y3)
    jax.block_until_ready(out3)
    ref3 = jnp.mean(jnp.sqrt((x3 - y3) ** 2 + EPS * EPS))
    assert jnp.allclose(out3, ref3, rtol=1e-5, atol=1e-6), (out3, ref3)

    # 4) bf16 inputs: native-dtype streaming + packed bf16 subtract in-kernel.
    xb = x.astype(jnp.bfloat16)
    yb = y.astype(jnp.bfloat16)
    outb = charbonnier_loss(xb, yb)
    jax.block_until_ready(outb)
    refb = jnp.mean(jnp.sqrt((xb.astype(jnp.float32)
                              - yb.astype(jnp.float32)) ** 2 + EPS * EPS))
    assert jnp.allclose(outb, refb, rtol=2e-2, atol=1e-3), (outb, refb)

    print("KERNEL_OK")
</pallas_src>

<mosaic_0001>
module attributes {stable_mosaic.version = 11 : i64} {
  func.func @_charbonnier_partial_kernel(%arg0: i32, %arg1: i32, %arg2: memref<16x128xf32, #tpu.memory_space<vmem>>, %arg3: memref<16x128xf32, #tpu.memory_space<vmem>>, %arg4: memref<1x1xf32, #tpu.memory_space<smem>>, %arg5: memref<8x128xf32, #tpu.memory_space<vmem>>) attributes {dimension_semantics = [#tpu.dimension_semantics<parallel>, #tpu.dimension_semantics<arbitrary>], iteration_bounds = array<i64: 1, 1>, scalar_prefetch = 0 : i64, scratch_operands = 1 : i64, tpu.core_type = #tpu.core_type<tc>, window_params = [{transform_indices = @transform_0, window_bounds = array<i64: 16, 128>}, {transform_indices = @transform_1, window_bounds = array<i64: 16, 128>}, {transform_indices = @transform_2, window_bounds = array<i64: 1, 1>}]} {
    %c0_i32 = arith.constant 0 : i32
    %0 = arith.cmpi eq, %arg1, %c0_i32 : i32
    %1 = arith.extui %0 : i1 to i32
    %c0_i32_0 = arith.constant 0 : i32
    %2 = arith.cmpi ne, %1, %c0_i32_0 : i32
    scf.if %2 {
      %cst_11 = arith.constant 0.000000e+00 : f32
      %18 = vector.broadcast %cst_11 : f32 to vector<8x128xf32>
      %c0_12 = arith.constant 0 : index
      %c0_13 = arith.constant 0 : index
      %19 = vector.load %arg5[%c0_12, %c0_13] : memref<8x128xf32, #tpu.memory_space<vmem>>, vector<8x128xf32>
      tpu.vector_store %arg5[%c0_12, %c0_13], %18 {strides = array<i32>} : memref<8x128xf32, #tpu.memory_space<vmem>>, vector<8x128xf32>,
    } else {
    }
    %c0 = arith.constant 0 : index
    %c0_1 = arith.constant 0 : index
    %3 = vector.load %arg2[%c0, %c0_1] : memref<16x128xf32, #tpu.memory_space<vmem>>, vector<16x128xf32>
    %c0_2 = arith.constant 0 : index
    %c0_3 = arith.constant 0 : index
    %4 = vector.load %arg3[%c0_2, %c0_3] : memref<16x128xf32, #tpu.memory_space<vmem>>, vector<16x128xf32>
    %5 = arith.subf %3, %4 : vector<16x128xf32>
    %6 = arith.mulf %5, %5 : vector<16x128xf32>
    %cst = arith.constant 9.99999997E-7 : f32
    %7 = vector.broadcast %cst : f32 to vector<16x128xf32>
    %8 = arith.addf %6, %7 : vector<16x128xf32>
    %9 = math.sqrt %8 : vector<16x128xf32>
    %c0_4 = arith.constant 0 : index
    %c0_5 = arith.constant 0 : index
    %10 = vector.load %arg5[%c0_4, %c0_5] : memref<8x128xf32, #tpu.memory_space<vmem>>, vector<8x128xf32>
    %11 = vector.shape_cast %9 : vector<16x128xf32> to vector<2x8x128xf32>
    %cst_6 = arith.constant dense<0.000000e+00> : vector<8x128xf32>
    %12 = vector.multi_reduction <add>, %11, %cst_6 [0] : vector<2x8x128xf32> to vector<8x128xf32>
    %13 = arith.addf %10, %12 : vector<8x128xf32>
    %c0_7 = arith.constant 0 : index
    %c0_8 = arith.constant 0 : index
    %14 = vector.load %arg5[%c0_7, %c0_8] : memref<8x128xf32, #tpu.memory_space<vmem>>, vector<8x128xf32>
    tpu.vector_store %arg5[%c0_7, %c0_8], %13 {strides = array<i32>} : memref<8x128xf32, #tpu.memory_space<vmem>>, vector<8x128xf32>,
    %c0_i32_9 = arith.constant 0 : i32
    %15 = arith.cmpi eq, %arg1, %c0_i32_9 : i32
    %16 = arith.extui %15 : i1 to i32
    %c0_i32_10 = arith.constant 0 : i32
    %17 = arith.cmpi ne, %16, %c0_i32_10 : i32
    scf.if %17 {
      %c0_11 = arith.constant 0 : index
      %c0_12 = arith.constant 0 : index
      %18 = vector.load %arg5[%c0_11, %c0_12] : memref<8x128xf32, #tpu.memory_space<vmem>>, vector<8x128xf32>
      %19 = vector.shape_cast %18 : vector<8x128xf32> to vector<1x8x128xf32>
      %cst_13 = arith.constant dense<0.000000e+00> : vector<1xf32>
      %20 = vector.multi_reduction <add>, %19, %cst_13 [1, 2] : vector<1x8x128xf32> to vector<1xf32>
      %21 = vector.shape_cast %20 : vector<1xf32> to vector<1x1x1xf32>
      %22 = vector.extract %21[0, 0, 0] : f32 from vector<1x1x1xf32>
      %c0_14 = arith.constant 0 : index
      %c0_15 = arith.constant 0 : index
      %23 = memref.load %arg4[%c0_14, %c0_15] : memref<1x1xf32, #tpu.memory_space<smem>>
      memref.store %22, %arg4[%c0_14, %c0_15] : memref<1x1xf32, #tpu.memory_space<smem>>
    } else {
    }
    return
  }
  func.func @transform_0(%arg0: i32, %arg1: i32) -> (i32, i32) {
    %c1_i32 = arith.constant 1 : i32
    %0 = arith.muli %arg0, %c1_i32 : i32
    %1 = arith.addi %0, %arg1 : i32
    %c0_i32 = arith.constant 0 : i32
    %2 = arith.minsi %1, %c0_i32 : i32
    %c0_i32_0 = arith.constant 0 : i32
    %c0_i32_1 = arith.constant 0 : i32
    return %2, %c0_i32_0 : i32, i32
  }
  func.func @transform_1(%arg0: i32, %arg1: i32) -> (i32, i32) {
    %c1_i32 = arith.constant 1 : i32
    %0 = arith.muli %arg0, %c1_i32 : i32
    %1 = arith.addi %0, %arg1 : i32
    %c0_i32 = arith.constant 0 : i32
    %2 = arith.minsi %1, %c0_i32 : i32
    %c0_i32_0 = arith.constant 0 : i32
    %c0_i32_1 = arith.constant 0 : i32
    return %2, %c0_i32_0 : i32, i32
  }
  func.func @transform_2(%arg0: i32, %arg1: i32) -> (i32, i32) {
    %c0_i32 = arith.constant 0 : i32
    %c0_i32_0 = arith.constant 0 : i32
    return %arg0, %c0_i32 : i32, i32
  }
}

</mosaic_0001>

<llo_original>
// kernel: tpu_custom_call.1
$region0: #{tpu_custom_call.1}
  #allocation0 [shape = 'u32[]', space=smem, size = 0x4, offset = 0x4, fixed_abs, tag = 'smem constant byte address 0x4 - core index']
  #allocation1 [shape = 'u32[144,128]{1,0:T(1,128)}', space=vmem, size = 0x12000, scoped, tag = 'internal scratch']
  #allocation2 [shape = 'f32[8,128]{1,0:T(8,128)}', space=vmem, size = 0x1000, scoped, tag = 'scratch operand']
  %s0 = inlined_call_operand.hbm [shape: f32[16,128], index: 0, kind: input, shape index: {}]
  %s1 = inlined_call_operand.hbm [shape: f32[16,128], index: 1, kind: input, shape index: {}]
  %s2 = inlined_call_operand.hbm [shape: f32[1,1], index: 2, kind: output, shape index: {}]
  %s3 = sld [smem:[#allocation0]]
  $region34: #{tpu_custom_call.1} parent=0
    _
  %s5 = ssub.s32 1, %s3
  %s6 = scalar_select 0, %s5, %s3
  $region1: #{tpu_custom_call.1} parent=0
    #allocation3 [shape = 'u8[8192]{0}', space=vmem, size = 0x2000, scoped, tag = 'input window, operand 0, single buffered']
    #allocation4 [shape = 's32[1]{0}', space=sflag, size = 0x4, scoped, tag = 'scoped memory for tpu_custom_call.1']
    #allocation5 [shape = 's32[1]{0}', space=sflag, size = 0x4, scoped, tag = 'scoped memory for tpu_custom_call.1']
    #allocation6 [shape = 'u8[8192]{0}', space=vmem, size = 0x2000, scoped, tag = 'input window, operand 1, single buffered']
    #allocation7 [shape = 's32[1]{0}', space=sflag, size = 0x4, scoped, tag = 'scoped memory for tpu_custom_call.1']
    #allocation8 [shape = 'u8[512]{0}', space=smem, size = 0x200, scoped, tag = 'output window, operand 0, single buffered']
    %7 = vsyncpa [#allocation4], 0
    %8 = vsyncpa [#allocation7], 0
    %9 = vsyncpa [#allocation5], 0
    // Predicated region
    $region2: #{tpu_custom_call.1} parent=1 // pred_check
      _
    $region3: #{tpu_custom_call.1} parent=1 // pred_check_branch
      %11 = sbr.rel (0) target = $region5
    $region4: #{tpu_custom_call.1} parent=1 // pred_region
      %s12 = sadd.s32 0, 0
      %p13 = scmp.lt.s32.totalorder %s12, 0
      %s14 = scalar_select %p13, %s12, 0
      %s15 = smul.u32 2, %s14
      %s17 = ssub.s32 256, 256
      %18 = vsyncadd [#allocation4], %s17
      %s19 = smul.addr %s15, 128
      %s20 = scalar_lea.hbm %s0, %s19
      %s21 = sshll.u32 [#allocation3], 4
      %s22 = int_to_ptr.vmem [resolvable:$true] %s21
      %27 = dma.hbm_to_vmem [thread:$0]  %s20, 256, %s22, [#allocation4], 128, 128, 8
    $region5: #{tpu_custom_call.1} parent=1 // pred_fallthru
      _
    // Predicated region
    $region6: #{tpu_custom_call.1} parent=1 // pred_check
      _
    $region7: #{tpu_custom_call.1} parent=1 // pred_check_branch
      %29 = sbr.rel (0) target = $region9
    $region8: #{tpu_custom_call.1} parent=1 // pred_region
      %s30 = sadd.s32 0, 0
      %p31 = scmp.lt.s32.totalorder %s30, 0
      %s32 = scalar_select %p31, %s30, 0
      %s33 = smul.u32 2, %s32
      %s35 = ssub.s32 256, 256
      %36 = vsyncadd [#allocation7], %s35
      %s37 = smul.addr %s33, 128
      %s38 = scalar_lea.hbm %s1, %s37
      %s39 = sshll.u32 [#allocation6], 4
      %s40 = int_to_ptr.vmem [resolvable:$true] %s39
      %45 = dma.hbm_to_vmem [thread:$0]  %s38, 256, %s40, [#allocation7], 128, 128, 8
    $region9: #{tpu_custom_call.1} parent=1 // pred_fallthru
      _
    // Predicated region
    $region10: #{tpu_custom_call.1} parent=1 // pred_check
      _
    $region11: #{tpu_custom_call.1} parent=1 // pred_check_branch
      %47 = sbr.rel (0) target = $region13
    $region12: #{tpu_custom_call.1} parent=1 // pred_region
      %48 = dma.done [#allocation4], 256
    $region13: #{tpu_custom_call.1} parent=1 // pred_fallthru
      _
    // Predicated region
    $region14: #{tpu_custom_call.1} parent=1 // pred_check
      _
    $region15: #{tpu_custom_call.1} parent=1 // pred_check_branch
      %50 = sbr.rel (0) target = $region17
    $region16: #{tpu_custom_call.1} parent=1 // pred_region
      %51 = dma.done [#allocation7], 256
    $region17: #{tpu_custom_call.1} parent=1 // pred_fallthru
      _
    %s52 = sadd.s32 0, 0
    %p53 = scmp.lt.s32.totalorder %s52, 0
    %s54 = scalar_select %p53, %s52, 0
    %s55 = smul.u32 2, %s54
    %s56 = sadd.s32 0, 0
    %p57 = scmp.lt.s32.totalorder %s56, 0
    %s58 = scalar_select %p57, %s56, 0
    %s59 = smul.u32 2, %s58
    %p60 = scmp.eq.s32.totalorder 0, 0
    // Predicated region
    $region18: #{tpu_custom_call.1} parent=1 // pred_check
      %p61 = pneg %p60
    $region19: #{tpu_custom_call.1} parent=1 // pred_check_branch
      %63 = sbr.rel (%p61) target = $region21
    $region20: #{tpu_custom_call.1} parent=1 // pred_region
      %64 = vst [vmem:[#allocation2] sm:$0xff] 0.0
    $region21: #{tpu_custom_call.1} parent=1 // pred_fallthru
      _
    %v65 = vld [vmem:[#allocation3] sm:$0xff]
    %v66 = vld [vmem:[#allocation3 + $0x8] sm:$0xff]
    %v67 = vld [vmem:[#allocation6] sm:$0xff]
    %v68 = vld [vmem:[#allocation6 + $0x8] sm:$0xff]
    %v69 = vsub.f32 %v65, %v67
    %v70 = vsub.f32 %v66, %v68
    %v71 = vmul.f32 %v69, %v69
    %v72 = vmul.f32 %v70, %v70
    %v73 = vadd.f32 %v71, 1e-06
    %v74 = vadd.f32 %v72, 1e-06
    %v75 = vrsqrt.pop %v73
    %v76 = vmul.f32 %v73, %v75
    %vm77 = vcmp.eq.f32.partialorder %v73, inf
    %v78 = vsel %vm77, %v73, %v76
    %vm79 = vcmp.eq.f32.partialorder %v73, 0.0
    %v80 = vand.u32 %v73, 2147483648
    %v81 = vsel %vm79, %v80, %v78
    %v82 = vrsqrt.pop %v74
    %v83 = vmul.f32 %v74, %v82
    %vm84 = vcmp.eq.f32.partialorder %v74, inf
    %v85 = vsel %vm84, %v74, %v83
    %vm86 = vcmp.eq.f32.partialorder %v74, 0.0
    %v87 = vand.u32 %v74, 2147483648
    %v88 = vsel %vm86, %v87, %v85
    %v89 = vld [vmem:[#allocation2] sm:$0xff]
    %v90 = vadd.f32 %v81, %v88
    %v91 = vadd.f32 %v89, %v90
    %92 = vst [vmem:[#allocation2] sm:$0xff] %v91
    // Predicated region
    $region22: #{tpu_custom_call.1} parent=1 // pred_check
      %p93 = pneg %p60
    $region23: #{tpu_custom_call.1} parent=1 // pred_check_branch
      %95 = sbr.rel (%p93) target = $region25
    $region24: #{tpu_custom_call.1} parent=1 // pred_region
      %v96 = vld [vmem:[#allocation2] sm:$0xff]
      %97 = vadd.xlane.f32.xlu0 %v96
      %v98 = vpop.xlane.xlu0 %97
      %v99 = vrot.slane %v98, 4
      %v100 = vadd.f32 %v98, %v99
      %v101 = vrot.slane %v100, 2
      %v102 = vadd.f32 %v100, %v101
      %v103 = vrot.slane %v102, 1
      %v104 = vadd.f32 %v102, %v103
      %s105 = vtos %v104
      %s106 = scalar_lea.smem [#allocation8], 0
      %107 = sst [smem:[%s106]] %s105
    $region25: #{tpu_custom_call.1} parent=1 // pred_fallthru
      _
    // Predicated region
    $region26: #{tpu_custom_call.1} parent=1 // pred_check
      _
    $region27: #{tpu_custom_call.1} parent=1 // pred_check_branch
      %109 = sbr.rel (0) target = $region29
    $region28: #{tpu_custom_call.1} parent=1 // pred_region
      %s111 = ssub.s32 16, 16
      %112 = vsyncadd [#allocation5], %s111
      %115 = dma.smem_to_hbm [#allocation8], 16, %s2, [#allocation5]
    $region29: #{tpu_custom_call.1} parent=1 // pred_fallthru
      _
    // Predicated region
    $region30: #{tpu_custom_call.1} parent=1 // pred_check
      _
    $region31: #{tpu_custom_call.1} parent=1 // pred_check_branch
      %117 = sbr.rel (0) target = $region33
    $region32: #{tpu_custom_call.1} parent=1 // pred_region
      %118 = dma.done [#allocation5], 16
    $region33: #{tpu_custom_call.1} parent=1 // pred_fallthru
      _
    %119 = sfence
    %120 = vsyncpa [#allocation4], 1
    %121 = vsyncpa [#allocation7], 1
    %122 = vsyncpa [#allocation5], 1

</llo_original>
